<compile_context>
chip_gen: v6e
topology: v6e:2x2x1
jax: 0.10.0
libtpu: 0.0.40
codegen_flags: <defaults>
</compile_context>

<pallas_src>
import functools

import jax
import jax.numpy as jnp
from jax.experimental import pallas as pl
from jax.experimental.pallas import tpu as pltpu


NCORES = 2  # leading "parallel" grid axis (used by multi-TensorCore chips, e.g. v7x)


def _round_up(a: int, m: int) -> int:
    return (a + m - 1) // m * m


def _cdiv(a: int, b: int) -> int:
    return -(-a // b)


def _plan_tiles(batch: int, d: int, itemsize: int, n_inputs: int):
    """Pick a batch tile size from a VMEM budget for the double-buffered x tiles."""
    budget = 20 * 1024 * 1024  # bytes for all double-buffered activation tiles
    tb_cap = budget // max(1, 2 * n_inputs * d * itemsize)
    tb_cap = max(8, min(512, (tb_cap // 8) * 8))
    rows8 = _round_up(batch, 8)                      # sublane-aligned row count
    # Give each core roughly half the rows so both TCs get work on v7x.
    tb = min(tb_cap, _round_up(_cdiv(rows8, NCORES), 8))
    total_tiles = _cdiv(rows8, tb)                   # genuine tiles covering [0, rows8)
    tiles_per_core = _cdiv(total_tiles, NCORES)
    return tb, total_tiles, tiles_per_core, rows8


def _gan_bce_kernel(*refs, targets, inv_b, batch_size, tb, tiles_per_core):
    """Per-tile discriminator MLP + target-specialized BCE partial sums."""
    n = len(targets)
    x_refs = refs[:n]
    w1_ref, b1_ref, w2t_ref, b2_ref, o_ref, acc_ref = refs[n:]

    c = pl.program_id(0)  # core / batch-shard index (parallel)
    t = pl.program_id(1)  # batch tile index within the shard (arbitrary / reduction)

    @pl.when(t == 0)
    def _init():
        acc_ref[...] = jnp.zeros_like(acc_ref)

    # Logical (UNclamped) row range of this grid step.  Overshooting steps of a
    # core (clamped in the index_map to re-read an in-bounds block) and the
    # partially-out-of-range final tile contribute nothing through this mask.
    row0 = (c * tiles_per_core + t) * tb
    rows = jax.lax.broadcasted_iota(jnp.int32, (tb, 1), 0) + row0
    valid = rows < batch_size

    w1 = w1_ref[...]     # (D, HIDp), x dtype
    b1 = b1_ref[...]     # (1, HIDp), f32
    w2t = w2t_ref[...]   # (1, HIDp), f32 (transposed second layer)
    b2 = b2_ref[...]     # (1, 1),    f32

    tile_sum = jnp.zeros((1, 1), jnp.float32)
    for x_ref, target in zip(x_refs, targets):
        h = jnp.dot(x_ref[...], w1, preferred_element_type=jnp.float32)  # MXU
        h = jnp.maximum(h + b1, 0.0)                                     # ReLU (VPU)
        # N=1 matmul done as VPU multiply + XLU lane reduce (keeps MXU free).
        logits = jnp.sum(h * w2t, axis=-1, keepdims=True) + b2           # (tb, 1)
        p = jax.nn.sigmoid(logits)
        # nn.BCELoss semantics (log clamped at -100, mean reduction applied via
        # masked sum * 1/B at finalize).  Constant 0/1 target -> one log term.
        if target >= 0.5:
            loss = -jnp.maximum(jnp.log(p), -100.0)
        else:
            loss = -jnp.maximum(jnp.log(1.0 - p), -100.0)
        tile_sum = tile_sum + jnp.sum(
            jnp.where(valid, loss, 0.0), axis=(0, 1), keepdims=True)

    acc_ref[...] += tile_sum

    @pl.when(t == tiles_per_core - 1)
    def _finalize():
        # Lane/sublane-aligned (8, 128) partial-sum block for this core.
        o_ref[...] = jnp.broadcast_to(acc_ref[...] * inv_b, o_ref.shape)


def gan_bce(xs, targets, params):
    """sum_i mean(BCELoss(D(xs[i]), full(targets[i]))) as ONE Pallas call."""
    assert len(xs) == len(targets) and len(xs) >= 1
    batch = xs[0].shape[0]
    for x in xs:
        assert x.shape[0] == batch, "all inputs must share the batch size"

    # Flatten NCHW -> (B, D) in the SOURCE dtype (no wrapper f32 cast).
    flats = [x.reshape(batch, -1) for x in xs]
    d = flats[0].shape[1]
    x_dtype = flats[0].dtype
    itemsize = jnp.dtype(x_dtype).itemsize
    n_x = len(flats)

    w1, b1, w2, b2 = params
    hid = w1.shape[1]
    hid_p = _round_up(hid, 128)  # lane-dense hidden width (zero-pad is exact)

    # TODO(synk): the first-layer weight (D, HIDp) is kept fully resident in
    # VMEM (no K-tiling over D); fine for image-discriminator sizes, would need
    # a K reduction axis for very large flattened inputs.
    w1p = jnp.zeros((d, hid_p), w1.dtype).at[:, :hid].set(w1).astype(x_dtype)
    b1p = jnp.zeros((1, hid_p), jnp.float32).at[:, :hid].set(
        b1.reshape(1, hid).astype(jnp.float32))
    w2t = jnp.zeros((1, hid_p), jnp.float32).at[:, :hid].set(
        w2.reshape(1, hid).astype(jnp.float32))
    b2r = b2.reshape(1, 1).astype(jnp.float32)

    tb, total_tiles, tiles_per_core, rows8 = _plan_tiles(batch, d, itemsize, n_x)

    # Pad only to the next sublane multiple (<= 7 rows); never a block-multiple
    # copy of the whole input.
    if rows8 != batch:
        flats = [jnp.pad(f, ((0, rows8 - batch), (0, 0))) for f in flats]

    last_tile = total_tiles - 1

    def x_index_map(c, t):
        # Clamp so any overshooting final iterations of a core re-read an
        # in-bounds block; their rows are masked out inside the kernel.
        return (jnp.minimum(c * tiles_per_core + t, last_tile), 0)

    x_spec = pl.BlockSpec((tb, d), x_index_map)
    in_specs = [x_spec] * n_x + [
        pl.BlockSpec((d, hid_p), lambda c, t: (0, 0)),
        pl.BlockSpec((1, hid_p), lambda c, t: (0, 0)),
        pl.BlockSpec((1, hid_p), lambda c, t: (0, 0)),
        pl.BlockSpec((1, 1), lambda c, t: (0, 0)),
    ]
    out_spec = pl.BlockSpec((8, 128), lambda c, t: (0, c))
    out_shape = jax.ShapeDtypeStruct((8, 128 * NCORES), jnp.float32)

    # VMEM sizing: double-buffered x tiles + (conservatively double-buffered)
    # resident weights + output blocks + margin; clamp for v7x's 64 MiB VMEM.
    vmem_needed = (n_x * 2 * tb * d * itemsize
                   + 2 * (d * hid_p * itemsize + 2 * hid_p * 4 + 4)
                   + 2 * 8 * 128 * 4
                   + (2 << 20))
    vmem_limit = int(min(max(vmem_needed, 16 << 20), 48 << 20))

    eff_rows = NCORES * tiles_per_core * tb
    cost = pl.CostEstimate(
        flops=2 * n_x * eff_rows * d * hid_p + 4 * n_x * eff_rows * hid_p,
        transcendentals=2 * n_x * eff_rows,
        bytes_accessed=(n_x * rows8 * d * itemsize
                        + d * hid_p * itemsize + 2 * hid_p * 4 + 4
                        + 8 * 128 * NCORES * 4),
    )

    kernel = functools.partial(
        _gan_bce_kernel,
        targets=tuple(float(t) for t in targets),
        inv_b=1.0 / float(batch),
        batch_size=batch,
        tb=tb,
        tiles_per_core=tiles_per_core,
    )

    out = pl.pallas_call(
        kernel,
        out_shape=out_shape,
        grid_spec=pltpu.PrefetchScalarGridSpec(
            num_scalar_prefetch=0,
            grid=(NCORES, tiles_per_core),
            in_specs=in_specs,
            out_specs=out_spec,
            scratch_shapes=[pltpu.VMEM((1, 1), jnp.float32)],
        ),
        compiler_params=pltpu.CompilerParams(
            dimension_semantics=("parallel", "arbitrary"),
            vmem_limit_bytes=vmem_limit,
        ),
        cost_estimate=cost,
    )(*flats, w1p, b1p, w2t, b2r)

    # Sum the per-core partial means (lane 0 of each 128-lane block).
    return jnp.sum(out[0, 0::128])


class StandardGANLossPallas:
    """JAX/Pallas port of StandardGANLoss (forward pass semantics only)."""

    GENERATOR = "generator"
    DISCRIMINATOR = "discriminator"

    def __init__(self, disc_params, weight: float = 1.0):
        # Matches Loss.register_buffer('weight', ...) — stored, not applied in forward.
        self.weight = jnp.asarray(weight, dtype=jnp.float32)
        self.disc_params = disc_params

    def __call__(self, batch, output, optimization_mode):
        if optimization_mode == self.GENERATOR:
            # BCE(D(output), ones(B, 1))
            return gan_bce([output], [1.0], self.disc_params)
        elif optimization_mode == self.DISCRIMINATOR:
            # BCE(D(output), zeros(B,1)) + BCE(D(batch), ones(B,1)) — fused call.
            return gan_bce([output, batch], [0.0, 1.0], self.disc_params)
        raise ValueError(f"unknown optimization mode: {optimization_mode}")


def _reference_loss(batch, output, params, mode):
    """Pure-JAX reference of the same math (for correctness check)."""
    w1, b1, w2, b2 = params

    def disc(x):
        xf = x.reshape(x.shape[0], -1).astype(jnp.float32)
        h = jnp.maximum(xf @ w1 + b1, 0.0)
        return jax.nn.sigmoid(h @ w2 + b2)

    def bce(p, y):
        lp = jnp.maximum(jnp.log(p), -100.0)
        l1p = jnp.maximum(jnp.log(1.0 - p), -100.0)
        return jnp.mean(-(y * lp + (1.0 - y) * l1p))

    if mode == StandardGANLossPallas.GENERATOR:
        return bce(disc(output), 1.0)
    return bce(disc(output), 0.0) + bce(disc(batch), 1.0)


if __name__ == "__main__":
    # Small shapes consistent with a GAN image discriminator.
    B, C, H, W = 2, 4, 16, 16
    D = C * H * W          # 1024
    HID = 32

    key = jax.random.PRNGKey(0)
    k_batch, k_out, k_w1, k_w2 = jax.random.split(key, 4)

    # Synthetic discriminator: Linear(D, HID) -> ReLU -> Linear(HID, 1) -> Sigmoid
    # TODO(synk): the PyTorch module takes an arbitrary discriminator nn.Module;
    # this kernel hard-codes the Linear-ReLU-Linear-Sigmoid shape used here.
    w1 = jax.random.normal(k_w1, (D, HID), dtype=jnp.float32) * 0.02
    b1 = jnp.zeros((1, HID), dtype=jnp.float32)
    w2 = jax.random.normal(k_w2, (HID, 1), dtype=jnp.float32) * 0.02
    b2 = jnp.zeros((1, 1), dtype=jnp.float32)
    params = (w1, b1, w2, b2)

    batch = jax.random.normal(k_batch, (B, C, H, W), dtype=jnp.float32)   # "real" data
    output = jax.random.normal(k_out, (B, C, H, W), dtype=jnp.float32)    # generator output

    loss_mod = StandardGANLossPallas(params, weight=1.0)

    gen_loss = jax.block_until_ready(
        loss_mod(batch, output, StandardGANLossPallas.GENERATOR))
    disc_loss = jax.block_until_ready(
        loss_mod(batch, output, StandardGANLossPallas.DISCRIMINATOR))

    # Correctness check vs pure-JAX reference.
    gen_ref = _reference_loss(batch, output, params, StandardGANLossPallas.GENERATOR)
    disc_ref = _reference_loss(batch, output, params, StandardGANLossPallas.DISCRIMINATOR)
    assert jnp.allclose(gen_loss, gen_ref, rtol=1e-5, atol=1e-6), (gen_loss, gen_ref)
    assert jnp.allclose(disc_loss, disc_ref, rtol=1e-5, atol=1e-6), (disc_loss, disc_ref)

    print("KERNEL_OK")
</pallas_src>

<mosaic_0001>
module attributes {stable_mosaic.version = 11 : i64} {
  func.func @_gan_bce_kernel(%arg0: i32, %arg1: i32, %arg2: memref<8x1024xf32, #tpu.memory_space<vmem>>, %arg3: memref<1024x128xf32, #tpu.memory_space<vmem>>, %arg4: memref<1x128xf32, #tpu.memory_space<vmem>>, %arg5: memref<1x128xf32, #tpu.memory_space<vmem>>, %arg6: memref<1x1xf32, #tpu.memory_space<vmem>>, %arg7: memref<8x128xf32, #tpu.memory_space<vmem>>, %arg8: memref<1x1xf32, #tpu.memory_space<vmem>>) attributes {dimension_semantics = [#tpu.dimension_semantics<parallel>, #tpu.dimension_semantics<arbitrary>], iteration_bounds = array<i64: 2, 1>, scalar_prefetch = 0 : i64, scratch_operands = 1 : i64, tpu.core_type = #tpu.core_type<tc>, window_params = [{transform_indices = @transform_0, window_bounds = array<i64: 8, 1024>}, {pipeline_mode = #tpu.pipeline_mode<synchronous>, transform_indices = @transform_1, window_bounds = array<i64: 1024, 128>}, {pipeline_mode = #tpu.pipeline_mode<synchronous>, transform_indices = @transform_2, window_bounds = array<i64: 1, 128>}, {pipeline_mode = #tpu.pipeline_mode<synchronous>, transform_indices = @transform_3, window_bounds = array<i64: 1, 128>}, {pipeline_mode = #tpu.pipeline_mode<synchronous>, transform_indices = @transform_4, window_bounds = array<i64: 1, 1>}, {transform_indices = @transform_5, window_bounds = array<i64: 8, 128>}]} {
    %c0_i32 = arith.constant 0 : i32
    %0 = arith.cmpi eq, %arg1, %c0_i32 : i32
    %1 = arith.extui %0 : i1 to i32
    %c0_i32_0 = arith.constant 0 : i32
    %2 = arith.cmpi ne, %1, %c0_i32_0 : i32
    scf.if %2 {
      %cst_24 = arith.constant 0.000000e+00 : f32
      %52 = vector.broadcast %cst_24 : f32 to vector<1x1xf32>
      %c0_25 = arith.constant 0 : index
      %c0_26 = arith.constant 0 : index
      %53 = vector.load %arg8[%c0_25, %c0_26] : memref<1x1xf32, #tpu.memory_space<vmem>>, vector<1x1xf32>
      tpu.vector_store %arg8[%c0_25, %c0_26], %52 {strides = array<i32>} : memref<1x1xf32, #tpu.memory_space<vmem>>, vector<1x1xf32>,
    } else {
    }
    %c1_i32 = arith.constant 1 : i32
    %3 = arith.muli %arg0, %c1_i32 : i32
    %4 = arith.addi %3, %arg1 : i32
    %c8_i32 = arith.constant 8 : i32
    %5 = arith.muli %4, %c8_i32 : i32
    %6 = tpu.iota {dimensions = array<i32: 0>} : vector<8x1xi32>
    %7 = vector.broadcast %5 : i32 to vector<8x1xi32>
    %8 = arith.addi %6, %7 : vector<8x1xi32>
    %c2_i32 = arith.constant 2 : i32
    %9 = vector.broadcast %c2_i32 : i32 to vector<8x1xi32>
    %10 = arith.cmpi slt, %8, %9 : vector<8x1xi32>
    %c0 = arith.constant 0 : index
    %c0_1 = arith.constant 0 : index
    %11 = vector.load %arg3[%c0, %c0_1] : memref<1024x128xf32, #tpu.memory_space<vmem>>, vector<1024x128xf32>
    %c0_2 = arith.constant 0 : index
    %c0_3 = arith.constant 0 : index
    %12 = vector.load %arg4[%c0_2, %c0_3] : memref<1x128xf32, #tpu.memory_space<vmem>>, vector<1x128xf32>
    %c0_4 = arith.constant 0 : index
    %c0_5 = arith.constant 0 : index
    %13 = vector.load %arg5[%c0_4, %c0_5] : memref<1x128xf32, #tpu.memory_space<vmem>>, vector<1x128xf32>
    %c0_6 = arith.constant 0 : index
    %c0_7 = arith.constant 0 : index
    %14 = vector.load %arg6[%c0_6, %c0_7] : memref<1x1xf32, #tpu.memory_space<vmem>>, vector<1x1xf32>
    %cst = arith.constant 0.000000e+00 : f32
    %15 = vector.broadcast %cst : f32 to vector<1x1xf32>
    %c0_8 = arith.constant 0 : index
    %c0_9 = arith.constant 0 : index
    %16 = vector.load %arg2[%c0_8, %c0_9] : memref<8x1024xf32, #tpu.memory_space<vmem>>, vector<8x1024xf32>
    %cst_10 = arith.constant dense<0.000000e+00> : vector<8x128xf32>
    %17 = tpu.matmul %16, %11, %cst_10 {dimension_numbers = #tpu.dot_dimension_numbers<[1], [0], [0], [1], [0, 0, 1, 1], [], []>} : vector<8x1024xf32>, vector<1024x128xf32>, vector<8x128xf32> -> vector<8x128xf32>
    %18 = vector.broadcast %12 : vector<1x128xf32> to vector<8x128xf32>
    %19 = arith.addf %17, %18 : vector<8x128xf32>
    %cst_11 = arith.constant 0.000000e+00 : f32
    %20 = vector.broadcast %cst_11 : f32 to vector<8x128xf32>
    %21 = arith.maximumf %19, %20 : vector<8x128xf32>
    %22 = vector.broadcast %13 : vector<1x128xf32> to vector<8x128xf32>
    %23 = arith.mulf %21, %22 : vector<8x128xf32>
    %cst_12 = arith.constant dense<0.000000e+00> : vector<8xf32>
    %24 = vector.multi_reduction <add>, %23, %cst_12 [1] : vector<8x128xf32> to vector<8xf32>
    %25 = vector.shape_cast %24 : vector<8xf32> to vector<8x1xf32>
    %26 = vector.broadcast %14 : vector<1x1xf32> to vector<8x1xf32>
    %27 = arith.addf %25, %26 : vector<8x1xf32>
    %28 = arith.negf %27 : vector<8x1xf32>
    %29 = math.exp %28 : vector<8x1xf32>
    %cst_13 = arith.constant 1.000000e+00 : f32
    %30 = vector.broadcast %cst_13 : f32 to vector<8x1xf32>
    %31 = arith.addf %30, %29 : vector<8x1xf32>
    %32 = arith.divf %30, %31 : vector<8x1xf32>
    %33 = math.log %32 : vector<8x1xf32>
    %cst_14 = arith.constant -1.000000e+02 : f32
    %34 = vector.broadcast %cst_14 : f32 to vector<8x1xf32>
    %35 = arith.maximumf %33, %34 : vector<8x1xf32>
    %cst_15 = arith.constant 0.000000e+00 : f32
    %36 = vector.broadcast %cst_15 : f32 to vector<8x1xf32>
    %37 = arith.subf %36, %35 : vector<8x1xf32>
    %cst_16 = arith.constant 0.000000e+00 : f32
    %38 = vector.broadcast %cst_16 : f32 to vector<8x1xf32>
    %39 = arith.select %10, %37, %38 : vector<8x1xi1>, vector<8x1xf32>
    %40 = vector.shape_cast %39 : vector<8x1xf32> to vector<1x8x1xf32>
    %cst_17 = arith.constant dense<0.000000e+00> : vector<1xf32>
    %41 = vector.multi_reduction <add>, %40, %cst_17 [1, 2] : vector<1x8x1xf32> to vector<1xf32>
    %42 = vector.shape_cast %41 : vector<1xf32> to vector<1x1x1xf32>
    %43 = vector.extract %42[0, 0, 0] : f32 from vector<1x1x1xf32>
    %44 = vector.broadcast %43 : f32 to vector<1x1xf32>
    %45 = arith.addf %15, %44 : vector<1x1xf32>
    %c0_18 = arith.constant 0 : index
    %c0_19 = arith.constant 0 : index
    %46 = vector.load %arg8[%c0_18, %c0_19] : memref<1x1xf32, #tpu.memory_space<vmem>>, vector<1x1xf32>
    %47 = arith.addf %46, %45 : vector<1x1xf32>
    %c0_20 = arith.constant 0 : index
    %c0_21 = arith.constant 0 : index
    %48 = vector.load %arg8[%c0_20, %c0_21] : memref<1x1xf32, #tpu.memory_space<vmem>>, vector<1x1xf32>
    tpu.vector_store %arg8[%c0_20, %c0_21], %47 {strides = array<i32>} : memref<1x1xf32, #tpu.memory_space<vmem>>, vector<1x1xf32>,
    %c0_i32_22 = arith.constant 0 : i32
    %49 = arith.cmpi eq, %arg1, %c0_i32_22 : i32
    %50 = arith.extui %49 : i1 to i32
    %c0_i32_23 = arith.constant 0 : i32
    %51 = arith.cmpi ne, %50, %c0_i32_23 : i32
    scf.if %51 {
      %c0_24 = arith.constant 0 : index
      %c0_25 = arith.constant 0 : index
      %52 = vector.load %arg8[%c0_24, %c0_25] : memref<1x1xf32, #tpu.memory_space<vmem>>, vector<1x1xf32>
      %cst_26 = arith.constant 5.000000e-01 : f32
      %53 = vector.broadcast %cst_26 : f32 to vector<1x1xf32>
      %54 = arith.mulf %52, %53 : vector<1x1xf32>
      %55 = vector.shape_cast %54 : vector<1x1xf32> to vector<1x1xf32>
      %56 = vector.broadcast %55 : vector<1x1xf32> to vector<8x128xf32>
      %c0_27 = arith.constant 0 : index
      %c0_28 = arith.constant 0 : index
      %57 = vector.load %arg7[%c0_27, %c0_28] : memref<8x128xf32, #tpu.memory_space<vmem>>, vector<8x128xf32>
      tpu.vector_store %arg7[%c0_27, %c0_28], %56 {strides = array<i32>} : memref<8x128xf32, #tpu.memory_space<vmem>>, vector<8x128xf32>,
    } else {
    }
    return
  }
  func.func @transform_0(%arg0: i32, %arg1: i32) -> (i32, i32) {
    %c1_i32 = arith.constant 1 : i32
    %0 = arith.muli %arg0, %c1_i32 : i32
    %1 = arith.addi %0, %arg1 : i32
    %c0_i32 = arith.constant 0 : i32
    %2 = arith.minsi %1, %c0_i32 : i32
    %c0_i32_0 = arith.constant 0 : i32
    %c0_i32_1 = arith.constant 0 : i32
    return %2, %c0_i32_0 : i32, i32
  }
  func.func @transform_1(%arg0: i32, %arg1: i32) -> (i32, i32) {
    %c0_i32 = arith.constant 0 : i32
    %c0_i32_0 = arith.constant 0 : i32
    %c0_i32_1 = arith.constant 0 : i32
    return %c0_i32, %c0_i32_0 : i32, i32
  }
  func.func @transform_2(%arg0: i32, %arg1: i32) -> (i32, i32) {
    %c0_i32 = arith.constant 0 : i32
    %c0_i32_0 = arith.constant 0 : i32
    %c0_i32_1 = arith.constant 0 : i32
    return %c0_i32, %c0_i32_0 : i32, i32
  }
  func.func @transform_3(%arg0: i32, %arg1: i32) -> (i32, i32) {
    %c0_i32 = arith.constant 0 : i32
    %c0_i32_0 = arith.constant 0 : i32
    %c0_i32_1 = arith.constant 0 : i32
    return %c0_i32, %c0_i32_0 : i32, i32
  }
  func.func @transform_4(%arg0: i32, %arg1: i32) -> (i32, i32) {
    %c0_i32 = arith.constant 0 : i32
    %c0_i32_0 = arith.constant 0 : i32
    %c0_i32_1 = arith.constant 0 : i32
    return %c0_i32, %c0_i32_0 : i32, i32
  }
  func.func @transform_5(%arg0: i32, %arg1: i32) -> (i32, i32) {
    %c0_i32 = arith.constant 0 : i32
    %c0_i32_0 = arith.constant 0 : i32
    return %c0_i32, %arg0 : i32, i32
  }
}

</mosaic_0001>

<llo_original>
// kernel: tpu_custom_call.1
$region0: #{tpu_custom_call.1}
  #allocation0 [shape = 'u32[]', space=smem, size = 0x4, offset = 0x4, fixed_abs, tag = 'smem constant byte address 0x4 - core index']
  #allocation1 [shape = 'u32[144,128]{1,0:T(1,128)}', space=vmem, size = 0x12000, scoped, tag = 'internal scratch']
  #allocation2 [shape = 'f32[1,1]{1,0:T(1,128)}', space=vmem, size = 0x200, scoped, tag = 'scratch operand']
  #allocation3 [shape = 'f32[1,1]{1,0:T(1,128)S(1)}', space=vmem, size = 0x200, scoped, tag = 'scoped memory for tpu_custom_call.1']
  %s0 = inlined_call_operand.hbm [shape: f32[8,1024], index: 0, kind: input, shape index: {}]
  %s1 = inlined_call_operand.hbm [shape: f32[1024,128], index: 1, kind: input, shape index: {}]
  %s2 = inlined_call_operand.vmem [shape: f32[1,128], index: 2, kind: input, shape index: {}]
  %s3 = inlined_call_operand.vmem [shape: f32[1,128], index: 3, kind: input, shape index: {}]
  %s4 = inlined_call_operand.<no memory space> [shape: f32[1,1], index: 4, kind: input, shape index: {}]
  %s5 = inlined_call_operand.hbm [shape: f32[8,256], index: 5, kind: output, shape index: {}]
  %s6 = sld [smem:[#allocation0]]
  $region69: #{tpu_custom_call.1} parent=0
    _
  %s8 = ssub.s32 1, %s6
  %s9 = scalar_select 0, %s8, %s6
  %v10 = vstv %s4
  %11 = vst [vmem:[#allocation3] sm:$0x1] %v10
  $region1: #{tpu_custom_call.1} parent=0
    #allocation4 [shape = 'u8[65536]{0}', space=vmem, size = 0x10000, scoped, tag = 'input window, operand 0']
    #allocation5 [shape = 's32[2]{0}', space=sflag, size = 0x8, scoped, tag = 'scoped memory for tpu_custom_call.1']
    #allocation6 [shape = 's32[2]{0}', space=sflag, size = 0x8, scoped, tag = 'scoped memory for tpu_custom_call.1']
    #allocation7 [shape = 'u8[524288]{0}', space=vmem, size = 0x80000, scoped, tag = 'input window, operand 1, single buffered']
    #allocation8 [shape = 's32[1]{0}', space=sflag, size = 0x4, scoped, tag = 'scoped memory for tpu_custom_call.1']
    #allocation9 [shape = 'u8[8192]{0}', space=vmem, size = 0x2000, scoped, tag = 'output window, operand 0']
    %12 = vsyncpa [#allocation5], 0
    %s13 = scalar_lea.sflag [#allocation5], 1
    %14 = vsyncpa %s13, 0
    %15 = vsyncpa [#allocation8], 0
    %16 = vsyncpa [#allocation6], 0
    %s17 = scalar_lea.sflag [#allocation6], 1
    %18 = vsyncpa %s17, 0
    loop: start=0, step=1, limit=4
    $region2: #{tpu_custom_call.1} parent=1 // loop_pre_header
      _
    $region3: #{tpu_custom_call.1} parent=1 // loop_header
      %s20 = sphi 0, %s24
      %p21 = scmp.ge.s32.totalorder %s20, 4
      %s27 = sphi 0, %s39
      %s28 = sphi 0, %s35
      %s29 = sphi 0, %s27
      %s30 = sphi 0, %s28
      %s31 = sphi 0, %s29
      %s32 = sphi 0, %s30
      %s48 = sphi 0, %s50
      %s51 = sphi 0, %s48
      %s52 = sphi 0, %s51
      %s68 = sphi 0, %s52
      %s72 = sphi 0, %s72
      %s74 = sphi 0, %s72
      %s75 = sphi 0, %s74
      %s89 = sphi 0, %s75
      %s93 = sphi 0, %s93
      %s95 = sphi 0, %s93
      %s96 = sphi 0, %s95
      %s110 = sphi 0, %s96
      %s114 = sphi 0, %s114
      %s116 = sphi 0, %s114
      %s117 = sphi 0, %s116
      %s131 = sphi 0, %s117
      %s135 = sphi 0, %s135
      %s137 = sphi 0, %s135
      %s138 = sphi 0, %s137
      %s152 = sphi 0, %s138
      %s158 = sphi 0, %s160
      %s161 = sphi 0, %s158
      %s162 = sphi 0, %s161
      %s178 = sphi 0, %s162
    $region4: #{tpu_custom_call.1} parent=1 // loop_header_branch
      %23 = sbr.rel (%p21) target = $region8
    $region5: #{tpu_custom_call.1} parent=1 // loop_body
      %s25 = ssub.s32 %s20, 1
      %s26 = ssub.s32 %s20, 2
      %s33 = sadd.s32 1, %s28
      %p34 = scmp.ge.s32.totalorder %s33, 1
      %s35 = scalar_select %p34, 0, %s33
      %s36 = sadd.s32 1, %s27
      %s37 = scalar_select %p34, %s36, %s27
      %p38 = scmp.ge.s32.totalorder %s37, 2
      %s39 = scalar_select %p38, 0, %s37
      %s40 = sadd.s32 %s27, %s28
      %p41 = scmp.lt.s32.totalorder %s40, 0
      %s42 = scalar_select %p41, %s40, 0
      %s43 = sadd.s32 %s39, %s35
      %p44 = scmp.lt.s32.totalorder %s43, 0
      %s45 = scalar_select %p44, %s43, 0
      %s46 = ssub.s32 %s42, %s45
      %p47 = scmp.eq.s32.totalorder %s46, 0
      %s49 = sadd.s32 %s48, 1
      %s50 = scalar_select %p47, %s48, %s49
      %p53 = pneg %p47
      %p54 = scmp.eq.s32.totalorder %s20, 1
      %p55 = por %p53, %p54
      %p56 = scmp.ne.s32.totalorder %s48, %s51
      %p57 = scmp.eq.s32.totalorder %s20, 0
      %p58 = por %p56, %p57
      %p59 = scmp.ne.s32.totalorder %s48, %s51
      %p60 = scmp.eq.s32.totalorder %s25, 1
      %p61 = por %p59, %p60
      %p62 = scmp.ne.s32.totalorder %s51, %s52
      %p63 = scmp.eq.s32.totalorder %s25, 0
      %p64 = por %p62, %p63
      %p65 = scmp.ne.s32.totalorder %s51, %s52
      %p66 = scmp.eq.s32.totalorder %s26, 1
      %p67 = por %p65, %p66
      %p69 = scmp.ne.s32.totalorder %s52, %s68
      %p70 = scmp.eq.s32.totalorder %s26, 0
      %p71 = por %p69, %p70
      %s73 = sadd.s32 %s72, 1
      %p76 = scmp.eq.s32.totalorder %s20, 1
      %p77 = scmp.ne.s32.totalorder %s72, %s74
      %p78 = scmp.eq.s32.totalorder %s20, 0
      %p79 = por %p77, %p78
      %p80 = scmp.ne.s32.totalorder %s72, %s74
      %p81 = scmp.eq.s32.totalorder %s25, 1
      %p82 = por %p80, %p81
      %p83 = scmp.ne.s32.totalorder %s74, %s75
      %p84 = scmp.eq.s32.totalorder %s25, 0
      %p85 = por %p83, %p84
      %p86 = scmp.ne.s32.totalorder %s74, %s75
      %p87 = scmp.eq.s32.totalorder %s26, 1
      %p88 = por %p86, %p87
      %p90 = scmp.ne.s32.totalorder %s75, %s89
      %p91 = scmp.eq.s32.totalorder %s26, 0
      %p92 = por %p90, %p91
      %s94 = sadd.s32 %s93, 1
      %p97 = scmp.eq.s32.totalorder %s20, 1
      %p98 = scmp.ne.s32.totalorder %s93, %s95
      %p99 = scmp.eq.s32.totalorder %s20, 0
      %p100 = por %p98, %p99
      %p101 = scmp.ne.s32.totalorder %s93, %s95
      %p102 = scmp.eq.s32.totalorder %s25, 1
      %p103 = por %p101, %p102
      %p104 = scmp.ne.s32.totalorder %s95, %s96
      %p105 = scmp.eq.s32.totalorder %s25, 0
      %p106 = por %p104, %p105
      %p107 = scmp.ne.s32.totalorder %s95, %s96
      %p108 = scmp.eq.s32.totalorder %s26, 1
      %p109 = por %p107, %p108
      %p111 = scmp.ne.s32.totalorder %s96, %s110
      %p112 = scmp.eq.s32.totalorder %s26, 0
      %p113 = por %p111, %p112
      %s115 = sadd.s32 %s114, 1
      %p118 = scmp.eq.s32.totalorder %s20, 1
      %p119 = scmp.ne.s32.totalorder %s114, %s116
      %p120 = scmp.eq.s32.totalorder %s20, 0
      %p121 = por %p119, %p120
      %p122 = scmp.ne.s32.totalorder %s114, %s116
      %p123 = scmp.eq.s32.totalorder %s25, 1
      %p124 = por %p122, %p123
      %p125 = scmp.ne.s32.totalorder %s116, %s117
      %p126 = scmp.eq.s32.totalorder %s25, 0
      %p127 = por %p125, %p126
      %p128 = scmp.ne.s32.totalorder %s116, %s117
      %p129 = scmp.eq.s32.totalorder %s26, 1
      %p130 = por %p128, %p129
      %p132 = scmp.ne.s32.totalorder %s117, %s131
      %p133 = scmp.eq.s32.totalorder %s26, 0
      %p134 = por %p132, %p133
      %s136 = sadd.s32 %s135, 1
      %p139 = scmp.eq.s32.totalorder %s20, 1
      %p140 = scmp.ne.s32.totalorder %s135, %s137
      %p141 = scmp.eq.s32.totalorder %s20, 0
      %p142 = por %p140, %p141
      %p143 = scmp.ne.s32.totalorder %s135, %s137
      %p144 = scmp.eq.s32.totalorder %s25, 1
      %p145 = por %p143, %p144
      %p146 = scmp.ne.s32.totalorder %s137, %s138
      %p147 = scmp.eq.s32.totalorder %s25, 0
      %p148 = por %p146, %p147
      %p149 = scmp.ne.s32.totalorder %s137, %s138
      %p150 = scmp.eq.s32.totalorder %s26, 1
      %p151 = por %p149, %p150
      %p153 = scmp.ne.s32.totalorder %s138, %s152
      %p154 = scmp.eq.s32.totalorder %s26, 0
      %p155 = por %p153, %p154
      %s156 = ssub.s32 %s27, %s39
      %p157 = scmp.eq.s32.totalorder %s156, 0
      %s159 = sadd.s32 %s158, 1
      %s160 = scalar_select %p157, %s158, %s159
      %p163 = pneg %p157
      %p164 = scmp.eq.s32.totalorder %s20, 1
      %p165 = por %p163, %p164
      %p166 = scmp.ne.s32.totalorder %s158, %s161
      %p167 = scmp.eq.s32.totalorder %s20, 0
      %p168 = por %p166, %p167
      %p169 = scmp.ne.s32.totalorder %s158, %s161
      %p170 = scmp.eq.s32.totalorder %s25, 1
      %p171 = por %p169, %p170
      %p172 = scmp.ne.s32.totalorder %s161, %s162
      %p173 = scmp.eq.s32.totalorder %s25, 0
      %p174 = por %p172, %p173
      %p175 = scmp.ne.s32.totalorder %s161, %s162
      %p176 = scmp.eq.s32.totalorder %s26, 1
      %p177 = por %p175, %p176
      %p179 = scmp.ne.s32.totalorder %s162, %s178
      %p180 = scmp.eq.s32.totalorder %s26, 0
      %p181 = por %p179, %p180
      %p182 = scmp.le.s32.totalorder 1, %s20
      %p183 = scmp.lt.s32.totalorder %s20, 3
      %p184 = pnand %p182, %p183
      %p185 = pneg %p184
      // Predicated region
      $region9: #{tpu_custom_call.1} parent=5 // pred_check
        _
      $region10: #{tpu_custom_call.1} parent=5 // pred_check_branch
        %187 = sbr.rel (%p184) target = $region12
      $region11: #{tpu_custom_call.1} parent=5 // pred_region
        %s188 = ssub.s32 %s20, 1
        // Predicated region
        $region13: #{tpu_custom_call.1} parent=11 // pred_check
          %p189 = pneg %p85
        $region14: #{tpu_custom_call.1} parent=11 // pred_check_branch
          %191 = sbr.rel (%p189) target = $region16
        $region15: #{tpu_custom_call.1} parent=11 // pred_region
          %s193 = ssub.s32 16384, 16384
          %194 = vsyncadd [#allocation8], %s193
          %s195 = sshll.u32 [#allocation7], 4
          %s196 = int_to_ptr.vmem [resolvable:$true] %s195
          %201 = dma.hbm_to_vmem [thread:$0]  %s1, 16384, %s196, [#allocation8], 128, 128, 8
        $region16: #{tpu_custom_call.1} parent=11 // pred_fallthru
          _
        // Predicated region
        $region17: #{tpu_custom_call.1} parent=11 // pred_check
          %p202 = pneg %p106
        $region18: #{tpu_custom_call.1} parent=11 // pred_check_branch
          %204 = sbr.rel (%p202) target = $region20
        $region19: #{tpu_custom_call.1} parent=11 // pred_region
          _
        $region20: #{tpu_custom_call.1} parent=11 // pred_fallthru
          _
        // Predicated region
        $region21: #{tpu_custom_call.1} parent=11 // pred_check
          %p205 = pneg %p127
        $region22: #{tpu_custom_call.1} parent=11 // pred_check_branch
          %207 = sbr.rel (%p205) target = $region24
        $region23: #{tpu_custom_call.1} parent=11 // pred_region
          _
        $region24: #{tpu_custom_call.1} parent=11 // pred_fallthru
          _
        // Predicated region
        $region25: #{tpu_custom_call.1} parent=11 // pred_check
          %p208 = pneg %p148
        $region26: #{tpu_custom_call.1} parent=11 // pred_check_branch
          %210 = sbr.rel (%p208) target = $region28
        $region27: #{tpu_custom_call.1} parent=11 // pred_region
          _
        $region28: #{tpu_custom_call.1} parent=11 // pred_fallthru
          _
      $region12: #{tpu_custom_call.1} parent=5 // pred_fallthru
        _
      %p211 = scmp.lt.s32.totalorder %s20, 2
      // Predicated region
      $region29: #{tpu_custom_call.1} parent=5 // pred_check
        %p212 = pneg %p211
      $region30: #{tpu_custom_call.1} parent=5 // pred_check_branch
        %214 = sbr.rel (%p212) target = $region32
      $region31: #{tpu_custom_call.1} parent=5 // pred_region
        // Predicated region
        $region33: #{tpu_custom_call.1} parent=31 // pred_check
          %p215 = pneg %p58
        $region34: #{tpu_custom_call.1} parent=31 // pred_check_branch
          %217 = sbr.rel (%p215) target = $region36
        $region35: #{tpu_custom_call.1} parent=31 // pred_region
          %s218 = sand.u32 %s48, 1
          %s219 = scalar_lea.sflag [#allocation5], %s218
          %s220 = sand.u32 %s48, 1
          %s221 = smul.addr %s220, 64
          %s222 = scalar_lea.vmem [#allocation4], %s221
          %s223 = sadd.s32 %s27, %s28
          %p224 = scmp.lt.s32.totalorder %s223, 0
          %s225 = scalar_select %p224, %s223, 0
          %s227 = ssub.s32 1024, 1024
          %228 = vsyncadd %s219, %s227
          %s229 = smul.addr %s225, 8
          %s230 = smul.addr %s229, 128
          %s231 = scalar_lea.hbm %s0, %s230
          %s233 = sshll.u32 %s222, 4
          %s234 = int_to_ptr.vmem [resolvable:$true] %s233
          %236 = dma.hbm_to_vmem [thread:$0]  %s231, 1024, %s234, %s219
        $region36: #{tpu_custom_call.1} parent=31 // pred_fallthru
          _
      $region32: #{tpu_custom_call.1} parent=5 // pred_fallthru
        _
      %p237 = scmp.le.s32.totalorder 1, %s20
      %p238 = scmp.lt.s32.totalorder %s20, 3
      %p239 = pnand %p237, %p238
      %p240 = pneg %p239
      // Predicated region
      $region37: #{tpu_custom_call.1} parent=5 // pred_check
        _
      $region38: #{tpu_custom_call.1} parent=5 // pred_check_branch
        %242 = sbr.rel (%p239) target = $region40
      $region39: #{tpu_custom_call.1} parent=5 // pred_region
        %s243 = ssub.s32 %s20, 1
        %s244 = sand.u32 %s51, 1
        %s245 = scalar_lea.sflag [#allocation5], %s244
        %s246 = sand.u32 %s51, 1
        %s247 = smul.addr %s246, 64
        %s248 = scalar_lea.vmem [#allocation4], %s247
        // Predicated region
        $region41: #{tpu_custom_call.1} parent=39 // pred_check
          %p249 = pneg %p64
        $region42: #{tpu_custom_call.1} parent=39 // pred_check_branch
          %251 = sbr.rel (%p249) target = $region44
        $region43: #{tpu_custom_call.1} parent=39 // pred_region
          %252 = dma.done %s245, 1024
        $region44: #{tpu_custom_call.1} parent=39 // pred_fallthru
          _
        // Predicated region
        $region45: #{tpu_custom_call.1} parent=39 // pred_check
          %p253 = pneg %p85
        $region46: #{tpu_custom_call.1} parent=39 // pred_check_branch
          %255 = sbr.rel (%p253) target = $region48
        $region47: #{tpu_custom_call.1} parent=39 // pred_region
          %256 = dma.done [#allocation8], 16384
        $region48: #{tpu_custom_call.1} parent=39 // pred_fallthru
          _
        %s257 = sand.u32 %s51, 1
        %s258 = scalar_lea.sflag [#allocation5], %s257
        %s259 = sand.u32 %s51, 1
        %s260 = smul.addr %s259, 64
        %s261 = scalar_lea.vmem [#allocation4], %s260
        %p262 = pneg %p64
        %p263 = pneg %p61
        %p264 = pneg %p85
        %p265 = pneg %p82
        %p266 = pneg %p106
        %p267 = pneg %p103
        %p268 = pneg %p127
        %p269 = pneg %p124
        %p270 = pneg %p148
        %p271 = pneg %p145
        %p272 = pneg %p174
        %p273 = pneg %p171
        %s274 = sand.u32 %s161, 1
        %s275 = scalar_lea.sflag [#allocation6], %s274
        %s276 = sand.u32 %s161, 1
        %s277 = smul.addr %s276, 8
        %s278 = scalar_lea.vmem [#allocation9], %s277
        %s279 = sadd.s32 %s29, %s30
        %p280 = scmp.lt.s32.totalorder %s279, 0
        %s281 = scalar_select %p280, %s279, 0
        %p282 = scmp.eq.s32.totalorder %s30, 0
        // Predicated region
        $region49: #{tpu_custom_call.1} parent=39 // pred_check
          %p283 = pneg %p282
        $region50: #{tpu_custom_call.1} parent=39 // pred_check_branch
          %285 = sbr.rel (%p283) target = $region52
        $region51: #{tpu_custom_call.1} parent=39 // pred_region
          %vm286 = vcmask 0
          %287 = vst.msk [vmem:[#allocation2] sm:$0x1] %vm286, 0.0
        $region52: #{tpu_custom_call.1} parent=39 // pred_fallthru
          _
        %s288 = sadd.s32 %s29, %s30
        %s289 = smul.u32 %s288, 8
        %v290 = vlaneseq
        %v291 = vshrl.u32 %v290, 7
        %v292 = vstv %s289
        %v293 = vadd.s32 %v291, %v292
        %vm294 = vcmp.lt.s32.totalorder %v293, 2
        %v295 = vld [vmem:[#allocation7] sm:$0xff]
        %v296 = vld [vmem:[#allocation7 + $0x8] sm:$0xff]
        %v297 = vld [vmem:[#allocation7 + $0x10] sm:$0xff]
        %v298 = vld [vmem:[#allocation7 + $0x18] sm:$0xff]
        %v299 = vld [vmem:[#allocation7 + $0x20] sm:$0xff]
        %v300 = vld [vmem:[#allocation7 + $0x28] sm:$0xff]
        %v301 = vld [vmem:[#allocation7 + $0x30] sm:$0xff]
        %v302 = vld [vmem:[#allocation7 + $0x38] sm:$0xff]
        %v303 = vld [vmem:[#allocation7 + $0x40] sm:$0xff]
        %v304 = vld [vmem:[#allocation7 + $0x48] sm:$0xff]
        %v305 = vld [vmem:[#allocation7 + $0x50] sm:$0xff]
        %v306 = vld [vmem:[#allocation7 + $0x58] sm:$0xff]
        %v307 = vld [vmem:[#allocation7 + $0x60] sm:$0xff]
        %v308 = vld [vmem:[#allocation7 + $0x68] sm:$0xff]
        %v309 = vld [vmem:[#allocation7 + $0x70] sm:$0xff]
        %v310 = vld [vmem:[#allocation7 + $0x78] sm:$0xff]
        %v311 = vld [vmem:[#allocation7 + $0x80] sm:$0xff]
        %v312 = vld [vmem:[#allocation7 + $0x88] sm:$0xff]
        %v313 = vld [vmem:[#allocation7 + $0x90] sm:$0xff]
        %v314 = vld [vmem:[#allocation7 + $0x98] sm:$0xff]
        %v315 = vld [vmem:[#allocation7 + $0xa0] sm:$0xff]
        %v316 = vld [vmem:[#allocation7 + $0xa8] sm:$0xff]
        %v317 = vld [vmem:[#allocation7 + $0xb0] sm:$0xff]
        %v318 = vld [vmem:[#allocation7 + $0xb8] sm:$0xff]
        %v319 = vld [vmem:[#allocation7 + $0xc0] sm:$0xff]
        %v320 = vld [vmem:[#allocation7 + $0xc8] sm:$0xff]
        %v321 = vld [vmem:[#allocation7 + $0xd0] sm:$0xff]
        %v322 = vld [vmem:[#allocation7 + $0xd8] sm:$0xff]
        %v323 = vld [vmem:[#allocation7 + $0xe0] sm:$0xff]
        %v324 = vld [vmem:[#allocation7 + $0xe8] sm:$0xff]
        %v325 = vld [vmem:[#allocation7 + $0xf0] sm:$0xff]
        %v326 = vld [vmem:[#allocation7 + $0xf8] sm:$0xff]
        %v327 = vld [vmem:[#allocation7 + $0x100] sm:$0xff]
        %v328 = vld [vmem:[#allocation7 + $0x108] sm:$0xff]
        %v329 = vld [vmem:[#allocation7 + $0x110] sm:$0xff]
        %v330 = vld [vmem:[#allocation7 + $0x118] sm:$0xff]
        %v331 = vld [vmem:[#allocation7 + $0x120] sm:$0xff]
        %v332 = vld [vmem:[#allocation7 + $0x128] sm:$0xff]
        %v333 = vld [vmem:[#allocation7 + $0x130] sm:$0xff]
        %v334 = vld [vmem:[#allocation7 + $0x138] sm:$0xff]
        %v335 = vld [vmem:[#allocation7 + $0x140] sm:$0xff]
        %v336 = vld [vmem:[#allocation7 + $0x148] sm:$0xff]
        %v337 = vld [vmem:[#allocation7 + $0x150] sm:$0xff]
        %v338 = vld [vmem:[#allocation7 + $0x158] sm:$0xff]
        %v339 = vld [vmem:[#allocation7 + $0x160] sm:$0xff]
        %v340 = vld [vmem:[#allocation7 + $0x168] sm:$0xff]
        %v341 = vld [vmem:[#allocation7 + $0x170] sm:$0xff]
        %v342 = vld [vmem:[#allocation7 + $0x178] sm:$0xff]
        %v343 = vld [vmem:[#allocation7 + $0x180] sm:$0xff]
        %v344 = vld [vmem:[#allocation7 + $0x188] sm:$0xff]
        %v345 = vld [vmem:[#allocation7 + $0x190] sm:$0xff]
        %v346 = vld [vmem:[#allocation7 + $0x198] sm:$0xff]
        %v347 = vld [vmem:[#allocation7 + $0x1a0] sm:$0xff]
        %v348 = vld [vmem:[#allocation7 + $0x1a8] sm:$0xff]
        %v349 = vld [vmem:[#allocation7 + $0x1b0] sm:$0xff]
        %v350 = vld [vmem:[#allocation7 + $0x1b8] sm:$0xff]
        %v351 = vld [vmem:[#allocation7 + $0x1c0] sm:$0xff]
        %v352 = vld [vmem:[#allocation7 + $0x1c8] sm:$0xff]
        %v353 = vld [vmem:[#allocation7 + $0x1d0] sm:$0xff]
        %v354 = vld [vmem:[#allocation7 + $0x1d8] sm:$0xff]
        %v355 = vld [vmem:[#allocation7 + $0x1e0] sm:$0xff]
        %v356 = vld [vmem:[#allocation7 + $0x1e8] sm:$0xff]
        %v357 = vld [vmem:[#allocation7 + $0x1f0] sm:$0xff]
        %v358 = vld [vmem:[#allocation7 + $0x1f8] sm:$0xff]
        %v359 = vld [vmem:[#allocation7 + $0x200] sm:$0xff]
        %v360 = vld [vmem:[#allocation7 + $0x208] sm:$0xff]
        %v361 = vld [vmem:[#allocation7 + $0x210] sm:$0xff]
        %v362 = vld [vmem:[#allocation7 + $0x218] sm:$0xff]
        %v363 = vld [vmem:[#allocation7 + $0x220] sm:$0xff]
        %v364 = vld [vmem:[#allocation7 + $0x228] sm:$0xff]
        %v365 = vld [vmem:[#allocation7 + $0x230] sm:$0xff]
        %v366 = vld [vmem:[#allocation7 + $0x238] sm:$0xff]
        %v367 = vld [vmem:[#allocation7 + $0x240] sm:$0xff]
        %v368 = vld [vmem:[#allocation7 + $0x248] sm:$0xff]
        %v369 = vld [vmem:[#allocation7 + $0x250] sm:$0xff]
        %v370 = vld [vmem:[#allocation7 + $0x258] sm:$0xff]
        %v371 = vld [vmem:[#allocation7 + $0x260] sm:$0xff]
        %v372 = vld [vmem:[#allocation7 + $0x268] sm:$0xff]
        %v373 = vld [vmem:[#allocation7 + $0x270] sm:$0xff]
        %v374 = vld [vmem:[#allocation7 + $0x278] sm:$0xff]
        %v375 = vld [vmem:[#allocation7 + $0x280] sm:$0xff]
        %v376 = vld [vmem:[#allocation7 + $0x288] sm:$0xff]
        %v377 = vld [vmem:[#allocation7 + $0x290] sm:$0xff]
        %v378 = vld [vmem:[#allocation7 + $0x298] sm:$0xff]
        %v379 = vld [vmem:[#allocation7 + $0x2a0] sm:$0xff]
        %v380 = vld [vmem:[#allocation7 + $0x2a8] sm:$0xff]
        %v381 = vld [vmem:[#allocation7 + $0x2b0] sm:$0xff]
        %v382 = vld [vmem:[#allocation7 + $0x2b8] sm:$0xff]
        %v383 = vld [vmem:[#allocation7 + $0x2c0] sm:$0xff]
        %v384 = vld [vmem:[#allocation7 + $0x2c8] sm:$0xff]
        %v385 = vld [vmem:[#allocation7 + $0x2d0] sm:$0xff]
        %v386 = vld [vmem:[#allocation7 + $0x2d8] sm:$0xff]
        %v387 = vld [vmem:[#allocation7 + $0x2e0] sm:$0xff]
        %v388 = vld [vmem:[#allocation7 + $0x2e8] sm:$0xff]
        %v389 = vld [vmem:[#allocation7 + $0x2f0] sm:$0xff]
        %v390 = vld [vmem:[#allocation7 + $0x2f8] sm:$0xff]
        %v391 = vld [vmem:[#allocation7 + $0x300] sm:$0xff]
        %v392 = vld [vmem:[#allocation7 + $0x308] sm:$0xff]
        %v393 = vld [vmem:[#allocation7 + $0x310] sm:$0xff]
        %v394 = vld [vmem:[#allocation7 + $0x318] sm:$0xff]
        %v395 = vld [vmem:[#allocation7 + $0x320] sm:$0xff]
        %v396 = vld [vmem:[#allocation7 + $0x328] sm:$0xff]
        %v397 = vld [vmem:[#allocation7 + $0x330] sm:$0xff]
        %v398 = vld [vmem:[#allocation7 + $0x338] sm:$0xff]
        %v399 = vld [vmem:[#allocation7 + $0x340] sm:$0xff]
        %v400 = vld [vmem:[#allocation7 + $0x348] sm:$0xff]
        %v401 = vld [vmem:[#allocation7 + $0x350] sm:$0xff]
        %v402 = vld [vmem:[#allocation7 + $0x358] sm:$0xff]
        %v403 = vld [vmem:[#allocation7 + $0x360] sm:$0xff]
        %v404 = vld [vmem:[#allocation7 + $0x368] sm:$0xff]
        %v405 = vld [vmem:[#allocation7 + $0x370] sm:$0xff]
        %v406 = vld [vmem:[#allocation7 + $0x378] sm:$0xff]
        %v407 = vld [vmem:[#allocation7 + $0x380] sm:$0xff]
        %v408 = vld [vmem:[#allocation7 + $0x388] sm:$0xff]
        %v409 = vld [vmem:[#allocation7 + $0x390] sm:$0xff]
        %v410 = vld [vmem:[#allocation7 + $0x398] sm:$0xff]
        %v411 = vld [vmem:[#allocation7 + $0x3a0] sm:$0xff]
        %v412 = vld [vmem:[#allocation7 + $0x3a8] sm:$0xff]
        %v413 = vld [vmem:[#allocation7 + $0x3b0] sm:$0xff]
        %v414 = vld [vmem:[#allocation7 + $0x3b8] sm:$0xff]
        %v415 = vld [vmem:[#allocation7 + $0x3c0] sm:$0xff]
        %v416 = vld [vmem:[#allocation7 + $0x3c8] sm:$0xff]
        %v417 = vld [vmem:[#allocation7 + $0x3d0] sm:$0xff]
        %v418 = vld [vmem:[#allocation7 + $0x3d8] sm:$0xff]
        %v419 = vld [vmem:[#allocation7 + $0x3e0] sm:$0xff]
        %v420 = vld [vmem:[#allocation7 + $0x3e8] sm:$0xff]
        %v421 = vld [vmem:[#allocation7 + $0x3f0] sm:$0xff]
        %v422 = vld [vmem:[#allocation7 + $0x3f8] sm:$0xff]
        %v423 = vld [vmem:[%s2] sm:$0x1]
        %v424 = vld [vmem:[%s3] sm:$0x1]
        %v425 = vld [vmem:[#allocation3] sm:$0x1]
        %v426 = vld [vmem:[%s248] sm:$0xff]
        %v427 = vld [vmem:[%s248 + $0x8] sm:$0xff]
        %v428 = vld [vmem:[%s248 + $0x10] sm:$0xff]
        %v429 = vld [vmem:[%s248 + $0x18] sm:$0xff]
        %v430 = vld [vmem:[%s248 + $0x20] sm:$0xff]
        %v431 = vld [vmem:[%s248 + $0x28] sm:$0xff]
        %v432 = vld [vmem:[%s248 + $0x30] sm:$0xff]
        %v433 = vld [vmem:[%s248 + $0x38] sm:$0xff]
        %v435 = vlaneseq
        %v436 = vshrl.u32 %v435, 7
        %v437 = vsub.s32 0, %v436
        %v438 = vrot.slane %v423, %v437
        %440 = vmatprep.subr.mxu0 0.0
        %441 = vmatpush1.msra.mxu0 %v310
        %442 = vmatprep.subr.mxu0 0.0
        %443 = vmatpush1.msra.mxu0 %v309
        %444 = vmatprep.subr.mxu0 0.0
        %445 = vmatpush1.msra.mxu0 %v308
        %446 = vmatprep.subr.mxu0 0.0
        %447 = vmatpush1.msra.mxu0 %v307
        %448 = vmatprep.subr.mxu0 0.0
        %449 = vmatpush1.msra.mxu0 %v306
        %450 = vmatprep.subr.mxu0 0.0
        %451 = vmatpush1.msra.mxu0 %v305
        %452 = vmatprep.subr.mxu0 0.0
        %453 = vmatpush1.msra.mxu0 %v304
        %454 = vmatprep.subr.mxu0 0.0
        %455 = vmatpush1.msra.mxu0 %v303
        %456 = vmatprep.subr.mxu0 0.0
        %457 = vmatpush1.msra.mxu0 %v302
        %458 = vmatprep.subr.mxu0 0.0
        %459 = vmatpush1.msra.mxu0 %v301
        %460 = vmatprep.subr.mxu0 0.0
        %461 = vmatpush1.msra.mxu0 %v300
        %462 = vmatprep.subr.mxu0 0.0
        %463 = vmatpush1.msra.mxu0 %v299
        %464 = vmatprep.subr.mxu0 0.0
        %465 = vmatpush1.msra.mxu0 %v298
        %466 = vmatprep.subr.mxu0 0.0
        %467 = vmatpush1.msra.mxu0 %v297
        %468 = vmatprep.subr.mxu0 0.0
        %469 = vmatpush1.msra.mxu0 %v296
        %470 = vmatprep.subr.mxu0 0.0
        %471 = vmatpush1.msra.mxu0 %v295
        %472 = vmatprep.subr.mxu0 0.0
        %473 = vmatpush2.msra.mxu0 %v326
        %474 = vmatprep.subr.mxu0 0.0
        %475 = vmatpush2.msra.mxu0 %v325
        %476 = vmatprep.subr.mxu0 0.0
        %477 = vmatpush2.msra.mxu0 %v324
        %478 = vmatprep.subr.mxu0 0.0
        %479 = vmatpush2.msra.mxu0 %v323
        %480 = vmatprep.subr.mxu0 0.0
        %481 = vmatpush2.msra.mxu0 %v322
        %482 = vmatprep.subr.mxu0 0.0
        %483 = vmatpush2.msra.mxu0 %v321
        %484 = vmatprep.subr.mxu0 0.0
        %485 = vmatpush2.msra.mxu0 %v320
        %486 = vmatprep.subr.mxu0 0.0
        %487 = vmatpush2.msra.mxu0 %v319
        %488 = vmatprep.subr.mxu0 0.0
        %489 = vmatpush2.msra.mxu0 %v318
        %490 = vmatprep.subr.mxu0 0.0
        %491 = vmatpush2.msra.mxu0 %v317
        %492 = vmatprep.subr.mxu0 0.0
        %493 = vmatpush2.msra.mxu0 %v316
        %494 = vmatprep.subr.mxu0 0.0
        %495 = vmatpush2.msra.mxu0 %v315
        %496 = vmatprep.subr.mxu0 0.0
        %497 = vmatpush2.msra.mxu0 %v314
        %498 = vmatprep.subr.mxu0 0.0
        %499 = vmatpush2.msra.mxu0 %v313
        %500 = vmatprep.subr.mxu0 0.0
        %501 = vmatpush2.msra.mxu0 %v312
        %502 = vmatprep.subr.mxu0 0.0
        %503 = vmatpush2.msra.mxu0 %v311
        %504 = vmatprep.mubr.f32.mxu0 %v427
        %505 = vmatmul.mubr.f32.gmra.mxu0 %v426
        %v506 = vpop.f32.mrf.mxu0
        %v507 = vadd.f32 %v438, %v506
        %v508 = vpop.f32.mrf.mxu0
        %509 = vdwg.mxu0
        %510 = vmatprep.subr.mxu0 0.0
        %511 = vmatpush1.msra.mxu0 %v342
        %512 = vmatprep.subr.mxu0 0.0
        %513 = vmatpush1.msra.mxu0 %v341
        %514 = vmatprep.subr.mxu0 0.0
        %515 = vmatpush1.msra.mxu0 %v340
        %516 = vmatprep.subr.mxu0 0.0
        %517 = vmatpush1.msra.mxu0 %v339
        %518 = vmatprep.subr.mxu0 0.0
        %519 = vmatpush1.msra.mxu0 %v338
        %520 = vmatprep.subr.mxu0 0.0
        %521 = vmatpush1.msra.mxu0 %v337
        %522 = vmatprep.subr.mxu0 0.0
        %523 = vmatpush1.msra.mxu0 %v336
        %524 = vmatprep.subr.mxu0 0.0
        %525 = vmatpush1.msra.mxu0 %v335
        %526 = vmatprep.subr.mxu0 0.0
        %527 = vmatpush1.msra.mxu0 %v334
        %528 = vmatprep.subr.mxu0 0.0
        %529 = vmatpush1.msra.mxu0 %v333
        %530 = vmatprep.subr.mxu0 0.0
        %531 = vmatpush1.msra.mxu0 %v332
        %532 = vmatprep.subr.mxu0 0.0
        %533 = vmatpush1.msra.mxu0 %v331
        %534 = vmatprep.subr.mxu0 0.0
        %535 = vmatpush1.msra.mxu0 %v330
        %536 = vmatprep.subr.mxu0 0.0
        %537 = vmatpush1.msra.mxu0 %v329
        %538 = vmatprep.subr.mxu0 0.0
        %539 = vmatpush1.msra.mxu0 %v328
        %540 = vmatprep.subr.mxu0 0.0
        %541 = vmatpush1.msra.mxu0 %v327
        %542 = vmatprep.subr.mxu0 0.0
        %543 = vmatpush2.msra.mxu0 %v358
        %544 = vmatprep.subr.mxu0 0.0
        %545 = vmatpush2.msra.mxu0 %v357
        %546 = vmatprep.subr.mxu0 0.0
        %547 = vmatpush2.msra.mxu0 %v356
        %548 = vmatprep.subr.mxu0 0.0
        %549 = vmatpush2.msra.mxu0 %v355
        %550 = vmatprep.subr.mxu0 0.0
        %551 = vmatpush2.msra.mxu0 %v354
        %552 = vmatprep.subr.mxu0 0.0
        %553 = vmatpush2.msra.mxu0 %v353
        %554 = vmatprep.subr.mxu0 0.0
        %555 = vmatpush2.msra.mxu0 %v352
        %556 = vmatprep.subr.mxu0 0.0
        %557 = vmatpush2.msra.mxu0 %v351
        %558 = vmatprep.subr.mxu0 0.0
        %559 = vmatpush2.msra.mxu0 %v350
        %560 = vmatprep.subr.mxu0 0.0
        %561 = vmatpush2.msra.mxu0 %v349
        %562 = vmatprep.subr.mxu0 0.0
        %563 = vmatpush2.msra.mxu0 %v348
        %564 = vmatprep.subr.mxu0 0.0
        %565 = vmatpush2.msra.mxu0 %v347
        %566 = vmatprep.subr.mxu0 0.0
        %567 = vmatpush2.msra.mxu0 %v346
        %568 = vmatprep.subr.mxu0 0.0
        %569 = vmatpush2.msra.mxu0 %v345
        %570 = vmatprep.subr.mxu0 0.0
        %571 = vmatpush2.msra.mxu0 %v344
        %572 = vmatprep.subr.mxu0 0.0
        %573 = vmatpush2.msra.mxu0 %v343
        %574 = vmatprep.mubr.f32.mxu0 %v429
        %575 = vmatmul.mubr.f32.gmra.mxu0 %v428
        %v576 = vpop.f32.mrf.mxu0
        %v577 = vadd.f32 %v507, %v576
        %v578 = vpop.f32.mrf.mxu0
        %579 = vdwg.mxu0
        %580 = vmatprep.subr.mxu0 0.0
        %581 = vmatpush1.msra.mxu0 %v374
        %582 = vmatprep.subr.mxu0 0.0
        %583 = vmatpush1.msra.mxu0 %v373
        %584 = vmatprep.subr.mxu0 0.0
        %585 = vmatpush1.msra.mxu0 %v372
        %586 = vmatprep.subr.mxu0 0.0
        %587 = vmatpush1.msra.mxu0 %v371
        %588 = vmatprep.subr.mxu0 0.0
        %589 = vmatpush1.msra.mxu0 %v370
        %590 = vmatprep.subr.mxu0 0.0
        %591 = vmatpush1.msra.mxu0 %v369
        %592 = vmatprep.subr.mxu0 0.0
        %593 = vmatpush1.msra.mxu0 %v368
        %594 = vmatprep.subr.mxu0 0.0
        %595 = vmatpush1.msra.mxu0 %v367
        %596 = vmatprep.subr.mxu0 0.0
        %597 = vmatpush1.msra.mxu0 %v366
        %598 = vmatprep.subr.mxu0 0.0
        %599 = vmatpush1.msra.mxu0 %v365
        %600 = vmatprep.subr.mxu0 0.0
        %601 = vmatpush1.msra.mxu0 %v364
        %602 = vmatprep.subr.mxu0 0.0
        %603 = vmatpush1.msra.mxu0 %v363
        %604 = vmatprep.subr.mxu0 0.0
        %605 = vmatpush1.msra.mxu0 %v362
        %606 = vmatprep.subr.mxu0 0.0
        %607 = vmatpush1.msra.mxu0 %v361
        %608 = vmatprep.subr.mxu0 0.0
        %609 = vmatpush1.msra.mxu0 %v360
        %610 = vmatprep.subr.mxu0 0.0
        %611 = vmatpush1.msra.mxu0 %v359
        %612 = vmatprep.subr.mxu0 0.0
        %613 = vmatpush2.msra.mxu0 %v390
        %614 = vmatprep.subr.mxu0 0.0
        %615 = vmatpush2.msra.mxu0 %v389
        %616 = vmatprep.subr.mxu0 0.0
        %617 = vmatpush2.msra.mxu0 %v388
        %618 = vmatprep.subr.mxu0 0.0
        %619 = vmatpush2.msra.mxu0 %v387
        %620 = vmatprep.subr.mxu0 0.0
        %621 = vmatpush2.msra.mxu0 %v386
        %622 = vmatprep.subr.mxu0 0.0
        %623 = vmatpush2.msra.mxu0 %v385
        %624 = vmatprep.subr.mxu0 0.0
        %625 = vmatpush2.msra.mxu0 %v384
        %626 = vmatprep.subr.mxu0 0.0
        %627 = vmatpush2.msra.mxu0 %v383
        %628 = vmatprep.subr.mxu0 0.0
        %629 = vmatpush2.msra.mxu0 %v382
        %630 = vmatprep.subr.mxu0 0.0
        %631 = vmatpush2.msra.mxu0 %v381
        %632 = vmatprep.subr.mxu0 0.0
        %633 = vmatpush2.msra.mxu0 %v380
        %634 = vmatprep.subr.mxu0 0.0
        %635 = vmatpush2.msra.mxu0 %v379
        %636 = vmatprep.subr.mxu0 0.0
        %637 = vmatpush2.msra.mxu0 %v378
        %638 = vmatprep.subr.mxu0 0.0
        %639 = vmatpush2.msra.mxu0 %v377
        %640 = vmatprep.subr.mxu0 0.0
        %641 = vmatpush2.msra.mxu0 %v376
        %642 = vmatprep.subr.mxu0 0.0
        %643 = vmatpush2.msra.mxu0 %v375
        %644 = vmatprep.mubr.f32.mxu0 %v431
        %645 = vmatmul.mubr.f32.gmra.mxu0 %v430
        %v646 = vpop.f32.mrf.mxu0
        %v647 = vadd.f32 %v577, %v646
        %v648 = vpop.f32.mrf.mxu0
        %649 = vdwg.mxu0
        %650 = vmatprep.subr.mxu0 0.0
        %651 = vmatpush1.msra.mxu0 %v406
        %652 = vmatprep.subr.mxu0 0.0
        %653 = vmatpush1.msra.mxu0 %v405
        %654 = vmatprep.subr.mxu0 0.0
        %655 = vmatpush1.msra.mxu0 %v404
        %656 = vmatprep.subr.mxu0 0.0
        %657 = vmatpush1.msra.mxu0 %v403
        %658 = vmatprep.subr.mxu0 0.0
        %659 = vmatpush1.msra.mxu0 %v402
        %660 = vmatprep.subr.mxu0 0.0
        %661 = vmatpush1.msra.mxu0 %v401
        %662 = vmatprep.subr.mxu0 0.0
        %663 = vmatpush1.msra.mxu0 %v400
        %664 = vmatprep.subr.mxu0 0.0
        %665 = vmatpush1.msra.mxu0 %v399
        %666 = vmatprep.subr.mxu0 0.0
        %667 = vmatpush1.msra.mxu0 %v398
        %668 = vmatprep.subr.mxu0 0.0
        %669 = vmatpush1.msra.mxu0 %v397
        %670 = vmatprep.subr.mxu0 0.0
        %671 = vmatpush1.msra.mxu0 %v396
        %672 = vmatprep.subr.mxu0 0.0
        %673 = vmatpush1.msra.mxu0 %v395
        %674 = vmatprep.subr.mxu0 0.0
        %675 = vmatpush1.msra.mxu0 %v394
        %676 = vmatprep.subr.mxu0 0.0
        %677 = vmatpush1.msra.mxu0 %v393
        %678 = vmatprep.subr.mxu0 0.0
        %679 = vmatpush1.msra.mxu0 %v392
        %680 = vmatprep.subr.mxu0 0.0
        %681 = vmatpush1.msra.mxu0 %v391
        %682 = vmatprep.subr.mxu0 0.0
        %683 = vmatpush2.msra.mxu0 %v422
        %684 = vmatprep.subr.mxu0 0.0
        %685 = vmatpush2.msra.mxu0 %v421
        %686 = vmatprep.subr.mxu0 0.0
        %687 = vmatpush2.msra.mxu0 %v420
        %688 = vmatprep.subr.mxu0 0.0
        %689 = vmatpush2.msra.mxu0 %v419
        %690 = vmatprep.subr.mxu0 0.0
        %691 = vmatpush2.msra.mxu0 %v418
        %692 = vmatprep.subr.mxu0 0.0
        %693 = vmatpush2.msra.mxu0 %v417
        %694 = vmatprep.subr.mxu0 0.0
        %695 = vmatpush2.msra.mxu0 %v416
        %696 = vmatprep.subr.mxu0 0.0
        %697 = vmatpush2.msra.mxu0 %v415
        %698 = vmatprep.subr.mxu0 0.0
        %699 = vmatpush2.msra.mxu0 %v414
        %700 = vmatprep.subr.mxu0 0.0
        %701 = vmatpush2.msra.mxu0 %v413
        %702 = vmatprep.subr.mxu0 0.0
        %703 = vmatpush2.msra.mxu0 %v412
        %704 = vmatprep.subr.mxu0 0.0
        %705 = vmatpush2.msra.mxu0 %v411
        %706 = vmatprep.subr.mxu0 0.0
        %707 = vmatpush2.msra.mxu0 %v410
        %708 = vmatprep.subr.mxu0 0.0
        %709 = vmatpush2.msra.mxu0 %v409
        %710 = vmatprep.subr.mxu0 0.0
        %711 = vmatpush2.msra.mxu0 %v408
        %712 = vmatprep.subr.mxu0 0.0
        %713 = vmatpush2.msra.mxu0 %v407
        %714 = vmatprep.mubr.f32.mxu0 %v433
        %715 = vmatmul.mubr.f32.gmra.mxu0 %v432
        %v716 = vpop.f32.mrf.mxu0
        %v717 = vadd.f32 %v647, %v716
        %v718 = vpop.f32.mrf.mxu0
        %719 = vdwg.mxu0
        %v720 = vmax.f32 %v717, 0.0
        %v722 = vlaneseq
        %v723 = vshrl.u32 %v722, 7
        %v724 = vsub.s32 0, %v723
        %v725 = vrot.slane %v424, %v724
        %v727 = vmul.f32 %v720, %v725
        %728 = vadd.xlane.f32.xlu0 %v727
        %v729 = vpop.xlane.xlu0 %728
        %v731 = vlaneseq
        %v732 = vshrl.u32 %v731, 7
        %v733 = vsub.s32 0, %v732
        %v734 = vrot.slane %v425, %v733
        %v736 = vadd.f32 %v729, %v734
        %v737 = vxor.u32 %v736, 2147483648
        %v738 = vmul.f32 %v737, 1.442695
        %v739 = vpow.pop %v738
        %v740 = vadd.f32 %v739, 1.0
        %v741 = vrcp.pop %v740
        %v742 = vmul.f32 1.0, %v741
        %v743 = vlog2.pop %v742
        %v744 = vmul.f32 %v743, 0.6931472
        %v745 = vmax.f32 %v744, -100.0
        %v746 = vsub.f32 0.0, %v745
        %v747 = vsel %vm294, %v746, 0.0
        %vm748 = vcmask 7168
        %v749 = vsel %vm748, %v747, 0.0
        %750 = vadd.xlane.f32.xlu0 %v749
        %v751 = vpop.xlane.xlu0 %750
        %v752 = vrot.slane %v751, 4
        %v753 = vadd.f32 %v751, %v752
        %v754 = vrot.slane %v753, 2
        %v755 = vadd.f32 %v753, %v754
        %v756 = vrot.slane %v755, 1
        %v757 = vadd.f32 %v755, %v756
        %s758 = vtos %v757
        %v759 = vstv %s758
        %v760 = vadd.f32 %v759, 0.0
        %v761 = vld [vmem:[#allocation2] sm:$0x1]
        %v762 = vadd.f32 %v761, %v760
        %vm763 = vcmask 0
        %764 = vst.msk [vmem:[#allocation2] sm:$0x1] %vm763, %v762
        // Predicated region
        $region53: #{tpu_custom_call.1} parent=39 // pred_check
          %p765 = pneg %p282
        $region54: #{tpu_custom_call.1} parent=39 // pred_check_branch
          %767 = sbr.rel (%p765) target = $region56
        $region55: #{tpu_custom_call.1} parent=39 // pred_region
          %v768 = vld [vmem:[#allocation2] sm:$0x1]
          %v769 = vmul.f32 %v768, 0.5
          %v771 = vlaneseq
          %v772 = vshrl.u32 %v771, 7
          %v773 = vsub.s32 0, %v772
          %v774 = vrot.slane %v769, %v773
          %775 = vset.pattern.permute.xlu0 0
          %776 = vperm.xlu0 %775, %v774
          %v777 = vpop.permute.xlu0 %776
          %779 = vst [vmem:[%s278] sm:$0xff] %v777
        $region56: #{tpu_custom_call.1} parent=39 // pred_fallthru
          _
        %s780 = sand.u32 %s161, 1
        %s781 = scalar_lea.sflag [#allocation6], %s780
        %s782 = sand.u32 %s161, 1
        %s783 = smul.addr %s782, 8
        %s784 = scalar_lea.vmem [#allocation9], %s783
        // Predicated region
        $region57: #{tpu_custom_call.1} parent=39 // pred_check
          %p785 = pneg %p171
        $region58: #{tpu_custom_call.1} parent=39 // pred_check_branch
          %787 = sbr.rel (%p785) target = $region60
        $region59: #{tpu_custom_call.1} parent=39 // pred_region
          %s789 = ssub.s32 128, 128
          %790 = vsyncadd %s781, %s789
          %s791 = smul.addr %s29, 128
          %s792 = scalar_lea.hbm %s5, %s791
          %s794 = sshll.u32 %s784, 4
          %s795 = int_to_ptr.vmem [resolvable:$true] %s794
          %797 = dma.vmem_to_hbm [thread:$0]  %s795, 128, %s792, %s781
        $region60: #{tpu_custom_call.1} parent=39 // pred_fallthru
          _
      $region40: #{tpu_custom_call.1} parent=5 // pred_fallthru
        _
      %p798 = scmp.le.s32.totalorder 2, %s20
      // Predicated region
      $region61: #{tpu_custom_call.1} parent=5 // pred_check
        %p799 = pneg %p798
      $region62: #{tpu_custom_call.1} parent=5 // pred_check_branch
        %801 = sbr.rel (%p799) target = $region64
      $region63: #{tpu_custom_call.1} parent=5 // pred_region
        %s802 = ssub.s32 %s20, 2
        // Predicated region
        $region65: #{tpu_custom_call.1} parent=63 // pred_check
          %p803 = pneg %p177
        $region66: #{tpu_custom_call.1} parent=63 // pred_check_branch
          %805 = sbr.rel (%p803) target = $region68
        $region67: #{tpu_custom_call.1} parent=63 // pred_region
          %s806 = sand.u32 %s162, 1
          %s807 = scalar_lea.sflag [#allocation6], %s806
          %s808 = sand.u32 %s162, 1
          %s809 = smul.addr %s808, 8
          %s810 = scalar_lea.vmem [#allocation9], %s809
          %811 = dma.done %s807, 128
        $region68: #{tpu_custom_call.1} parent=63 // pred_fallthru
          _
      $region64: #{tpu_custom_call.1} parent=5 // pred_fallthru
        _
    $region6: #{tpu_custom_call.1} parent=1 // loop_footer
      %s24 = sadd.s32 1, %s20
    $region7: #{tpu_custom_call.1} parent=1 // loop_footer_branch
      %19 = sbr.rel target = $region3
    $region8: #{tpu_custom_call.1} parent=1 // loop_exit
      _
    %812 = vsyncpa [#allocation5], 1
    %s813 = scalar_lea.sflag [#allocation5], 1
    %814 = vsyncpa %s813, 1
    %815 = vsyncpa [#allocation8], 1
    %816 = vsyncpa [#allocation6], 1
    %s817 = scalar_lea.sflag [#allocation6], 1
    %818 = vsyncpa %s817, 1

</llo_original>
